<compile_context>
chip_gen: v5e
topology: v5e:2x2
jax: 0.10.0
libtpu: 0.0.40
codegen_flags: <defaults>
</compile_context>

<pallas_src>
import jax
import jax.numpy as jnp
from jax.experimental import pallas as pl
from jax.experimental.pallas import tpu as pltpu


def _round_up(v, m):
    return (v + m - 1) // m * m


def _vmem_capacity_bytes():
    """Physical VMEM per TensorCore; conservative fallback if the query fails."""
    try:
        return int(pltpu.get_tpu_info().vmem_capacity_bytes)
    except Exception:
        return 64 * 2**20          # v7x-sized fallback is safe on every generation


def _seq_loss_kernel(x_ref, w_ref, corr_ref, out_ref):
    """One (tn, c_pad) row tile -> splat of sum_i log(x_i @ w + corr_i)."""
    base = jnp.dot(x_ref[...], w_ref[...],
                   preferred_element_type=jnp.float32)        # (tn, 1) f32, MXU
    denom = base + corr_ref[...]                               # weighted-softmax denom
    # TODO(synk): like the torch reference, denom == 0 (or x[i,t_i] == 0 in the
    # wrapper) yields -inf/NaN; no epsilon guard is applied.
    block_sum = jnp.sum(jnp.log(denom), axis=0, keepdims=True)  # (1, 1) f32
    out_ref[...] = jnp.broadcast_to(block_sum, out_ref.shape)   # lane-dense splat


def seq_loss(x, target, freq_info, gamma=0.9, _lambda=0.005, *, key=None,
             block_n=None, compute_dtype=jnp.bfloat16):
    """Pallas implementation of SEQLoss.forward (eval=False).

    Returns (loss, exclude_mask, threshold_mask) so callers can reproduce the
    per-call Bernoulli draw (kept in JAX glue, mirroring torch's .uniform_()).
    """
    x = jnp.asarray(x, jnp.float32)
    target = jnp.asarray(target, jnp.int32)
    n, c = x.shape
    if key is None:
        key = jax.random.PRNGKey(0)

    # exclude_func: per-class mask, 1 with probability gamma
    beta = jax.random.uniform(key, (c,), dtype=jnp.float32)
    excl = (beta < gamma).astype(jnp.float32)
    # threshold_func: tail-category indicator
    thr = (jnp.asarray(freq_info, jnp.float32) < _lambda).astype(jnp.float32)
    et = excl * thr                                            # (c,) in {0, 1}

    # ---- O(N) wrapper-side work (kept off the kernel's streaming path) ----
    x_q = x.astype(compute_dtype)                              # what the kernel streams
    x_g = x_q.astype(jnp.float32)
    picked = jnp.take_along_axis(x_g, target.reshape(n, 1), axis=1)[:, 0]   # x[i, t_i]
    et_t = et[target]                                          # (E*T)[t_i]
    corr = et_t * picked                                       # target-class correction
    sum_log_picked = jnp.sum(jnp.log(picked))

    # ---- padding / tiling ----
    itemsize = jnp.dtype(compute_dtype).itemsize
    c_pad = _round_up(max(c, 128), 128)
    n_r = _round_up(n, 8)

    vmem_cap = _vmem_capacity_bytes()
    # Budget for the double-buffered x tile; leave headroom for side inputs,
    # output block and compiler scratch (≈96 MiB on 128-MiB parts, 32 MiB on v7x).
    x_buf_budget = max(16 * 2**20, vmem_cap - 32 * 2**20)
    if block_n is not None:
        tn = max(8, _round_up(int(block_n), 8))
        grid_n = -(-n_r // tn)
    else:
        tn_max = max(8, (x_buf_budget // (2 * c_pad * itemsize)) // 8 * 8)
        tn = max(8, min(tn_max, 2048, n_r) // 8 * 8)
        grid_n = -(-n_r // tn)
        if grid_n == 1 and n_r >= 16:
            grid_n = 2                                   # let v7x megacore shard the tiles
        tn = min(tn, _round_up(-(-n_r // grid_n), 8))    # rebalance tiles across blocks
    n_pad = grid_n * tn

    x_p = jnp.zeros((n_pad, c_pad), compute_dtype).at[:n, :c].set(x_q)
    # padded rows: all-zero probs + corr = 1  =>  denom = 1  =>  zero contribution
    corr_p = jnp.ones((n_pad,), jnp.float32).at[:n].set(corr).reshape(n_pad, 1)
    # fused class weights (1 - E*T) as a column so the row reduction is one matmul
    w_col = jnp.zeros((c_pad, 1), compute_dtype).at[:c, 0].set(
        (1.0 - et).astype(compute_dtype))

    x_block_bytes = tn * c_pad * itemsize
    vmem_limit = int(min(vmem_cap - 8 * 2**20,
                         max(16 * 2**20, 2 * x_block_bytes + 8 * 2**20)))

    cost = pl.CostEstimate(
        flops=int(2 * n_pad * c_pad),
        transcendentals=int(n_pad),
        bytes_accessed=int(n_pad * c_pad * itemsize + n_pad * 4
                           + c_pad * itemsize + grid_n * 8 * 128 * 4),
    )

    # TODO(synk): for extreme class counts (where even an 8-row tile of c_pad
    # overflows the VMEM budget) an inner "arbitrary" class-tile axis with an
    # f32 accumulator would be needed; not required for realistic vocabularies.
    partial = pl.pallas_call(
        _seq_loss_kernel,
        out_shape=jax.ShapeDtypeStruct((grid_n, 8, 128), jnp.float32),
        grid=(grid_n,),
        in_specs=[
            pl.BlockSpec((tn, c_pad), lambda i: (i, 0)),   # x row tile (streamed)
            pl.BlockSpec((c_pad, 1), lambda i: (0, 0)),    # 1 - E*T column (shared)
            pl.BlockSpec((tn, 1), lambda i: (i, 0)),       # (E*T)[t_i] * x[i, t_i]
        ],
        out_specs=pl.BlockSpec((1, 8, 128), lambda i: (i, 0, 0)),  # lane-dense partial sum
        compiler_params=pltpu.CompilerParams(
            dimension_semantics=("parallel",),
            vmem_limit_bytes=vmem_limit,
        ),
        cost_estimate=cost,
    )(x_p, w_col, corr_p)

    sum_log_denom = jnp.sum(partial[:, 0, 0])
    # nll_loss with mean reduction over the real rows (padded rows contribute 0).
    loss = -(sum_log_picked - sum_log_denom) / float(n)
    return loss, excl, thr


def _reference(x, target, excl, thr):
    n, c = x.shape
    y_t = jax.nn.one_hot(target, c, dtype=jnp.float32)
    eql_w = 1.0 - excl[None, :] * thr[None, :] * (1.0 - y_t)
    denom = jnp.sum(eql_w * x, axis=1, keepdims=True)
    logit = jnp.log(x / denom)
    picked = jnp.take_along_axis(logit, target.reshape(n, 1), axis=1)
    return -jnp.mean(picked)


if __name__ == "__main__":
    key = jax.random.PRNGKey(0)
    k_x, k_t, k_e, k_x2, k_t2 = jax.random.split(key, 5)

    C = 5
    freq_info = [0.7, 0.14, 0.07, 0.05, 0.04]
    gamma, _lambda = 0.9, 0.06        # lambda chosen so tail classes exist

    # Small case (N=8): single row tile.
    N = 8
    x = jax.nn.softmax(jax.random.normal(k_x, (N, C), jnp.float32), axis=-1)
    target = jax.random.randint(k_t, (N,), 0, C, dtype=jnp.int32)
    loss, excl, thr = seq_loss(x, target, freq_info, gamma=gamma, _lambda=_lambda, key=k_e)
    loss = jax.block_until_ready(loss)
    # Reference on the same bf16-quantized probabilities the kernel consumes.
    x_ref = x.astype(jnp.bfloat16).astype(jnp.float32)
    ref = _reference(x_ref, target, excl, thr)
    assert jnp.allclose(loss, ref, rtol=1e-4, atol=1e-5), (loss, ref)

    # Larger ragged case (N=50): exercises row padding and the >=2-block grid.
    N2 = 50
    x2 = jax.nn.softmax(jax.random.normal(k_x2, (N2, C), jnp.float32), axis=-1)
    target2 = jax.random.randint(k_t2, (N2,), 0, C, dtype=jnp.int32)
    loss2, excl2, thr2 = seq_loss(x2, target2, freq_info, gamma=gamma, _lambda=_lambda, key=k_e)
    loss2 = jax.block_until_ready(loss2)
    x2_ref = x2.astype(jnp.bfloat16).astype(jnp.float32)
    ref2 = _reference(x2_ref, target2, excl2, thr2)
    assert jnp.allclose(loss2, ref2, rtol=1e-4, atol=1e-5), (loss2, ref2)

    # f32 streaming path (closer to the f32 torch reference); tolerance kept
    # loose to allow for MXU f32-matmul pass decomposition.
    loss32, excl3, thr3 = seq_loss(x2, target2, freq_info, gamma=gamma, _lambda=_lambda,
                                   key=k_e, compute_dtype=jnp.float32)
    loss32 = jax.block_until_ready(loss32)
    ref32 = _reference(x2, target2, excl3, thr3)
    assert jnp.allclose(loss32, ref32, rtol=2e-2, atol=2e-2), (loss32, ref32)

    print("KERNEL_OK")
</pallas_src>

<mosaic_0001>
module attributes {stable_mosaic.version = 11 : i64} {
  func.func @_seq_loss_kernel(%arg0: i32, %arg1: memref<8x128xbf16, #tpu.memory_space<vmem>>, %arg2: memref<128x1xbf16, #tpu.memory_space<vmem>>, %arg3: memref<8x1xf32, #tpu.memory_space<vmem>>, %arg4: memref<1x8x128xf32, #tpu.memory_space<vmem>>) attributes {dimension_semantics = [#tpu.dimension_semantics<parallel>], iteration_bounds = array<i64: 1>, scalar_prefetch = 0 : i64, scratch_operands = 0 : i64, tpu.core_type = #tpu.core_type<tc>, window_params = [{transform_indices = @transform_0, window_bounds = array<i64: 8, 128>}, {pipeline_mode = #tpu.pipeline_mode<synchronous>, transform_indices = @transform_1, window_bounds = array<i64: 128, 1>}, {transform_indices = @transform_2, window_bounds = array<i64: 8, 1>}, {transform_indices = @transform_3, window_bounds = array<i64: 1, 8, 128>}]} {
    %c0 = arith.constant 0 : index
    %c0_0 = arith.constant 0 : index
    %0 = vector.load %arg1[%c0, %c0_0] : memref<8x128xbf16, #tpu.memory_space<vmem>>, vector<8x128xbf16>
    %c0_1 = arith.constant 0 : index
    %c0_2 = arith.constant 0 : index
    %1 = vector.load %arg2[%c0_1, %c0_2] : memref<128x1xbf16, #tpu.memory_space<vmem>>, vector<128x1xbf16>
    %cst = arith.constant dense<0.000000e+00> : vector<8x1xf32>
    %2 = tpu.matmul %0, %1, %cst {dimension_numbers = #tpu.dot_dimension_numbers<[1], [0], [0], [1], [0, 0, 1, 1], [], []>} : vector<8x128xbf16>, vector<128x1xbf16>, vector<8x1xf32> -> vector<8x1xf32>
    %c0_3 = arith.constant 0 : index
    %c0_4 = arith.constant 0 : index
    %3 = vector.load %arg3[%c0_3, %c0_4] : memref<8x1xf32, #tpu.memory_space<vmem>>, vector<8x1xf32>
    %4 = arith.addf %2, %3 : vector<8x1xf32>
    %5 = math.log %4 : vector<8x1xf32>
    %cst_5 = arith.constant dense<0.000000e+00> : vector<1xf32>
    %6 = vector.multi_reduction <add>, %5, %cst_5 [0] : vector<8x1xf32> to vector<1xf32>
    %7 = vector.shape_cast %6 : vector<1xf32> to vector<1x1xf32>
    %8 = vector.shape_cast %7 : vector<1x1xf32> to vector<1x1x1xf32>
    %9 = vector.broadcast %8 : vector<1x1x1xf32> to vector<1x8x128xf32>
    %c0_6 = arith.constant 0 : index
    %c0_7 = arith.constant 0 : index
    %c0_8 = arith.constant 0 : index
    %10 = vector.load %arg4[%c0_6, %c0_7, %c0_8] : memref<1x8x128xf32, #tpu.memory_space<vmem>>, vector<1x8x128xf32>
    tpu.vector_store %arg4[%c0_6, %c0_7, %c0_8], %9 {strides = array<i32>} : memref<1x8x128xf32, #tpu.memory_space<vmem>>, vector<1x8x128xf32>,
    return
  }
  func.func @transform_0(%arg0: i32) -> (i32, i32) {
    %c0_i32 = arith.constant 0 : i32
    %c0_i32_0 = arith.constant 0 : i32
    return %arg0, %c0_i32 : i32, i32
  }
  func.func @transform_1(%arg0: i32) -> (i32, i32) {
    %c0_i32 = arith.constant 0 : i32
    %c0_i32_0 = arith.constant 0 : i32
    %c0_i32_1 = arith.constant 0 : i32
    return %c0_i32, %c0_i32_0 : i32, i32
  }
  func.func @transform_2(%arg0: i32) -> (i32, i32) {
    %c0_i32 = arith.constant 0 : i32
    %c0_i32_0 = arith.constant 0 : i32
    return %arg0, %c0_i32 : i32, i32
  }
  func.func @transform_3(%arg0: i32) -> (i32, i32, i32) {
    %c0_i32 = arith.constant 0 : i32
    %c0_i32_0 = arith.constant 0 : i32
    %c0_i32_1 = arith.constant 0 : i32
    return %arg0, %c0_i32, %c0_i32_0 : i32, i32, i32
  }
}

</mosaic_0001>

<llo_original>
// kernel: tpu_custom_call.1
$region0: #{tpu_custom_call.1}
  #allocation0 [shape = 'u32[]', space=smem, size = 0x4, offset = 0x4, fixed_abs, tag = 'smem constant byte address 0x4 - core index']
  #allocation1 [shape = 'u32[72,128]{1,0:T(1,128)}', space=vmem, size = 0x9000, scoped, tag = 'internal scratch']
  %s0 = inlined_call_operand.vmem [shape: bf16[8,128], index: 0, kind: input, shape index: {}]
  %s1 = inlined_call_operand.vmem [shape: bf16[128,1], index: 1, kind: input, shape index: {}]
  %s2 = inlined_call_operand.vmem [shape: f32[8,1], index: 2, kind: input, shape index: {}]
  %s3 = inlined_call_operand.hbm [shape: f32[1,8,128], index: 3, kind: output, shape index: {}]
  %s4 = sld [smem:[#allocation0]]
  $region22: #{tpu_custom_call.1} parent=0
    _
  %s6 = ssub.s32 1, %s4
  %s7 = scalar_select 0, %s6, %s4
  $region1: #{tpu_custom_call.1} parent=0
    #allocation2 [shape = 'u8[4096]{0}', space=vmem, size = 0x1000, scoped, tag = 'output window, operand 0, single buffered']
    #allocation3 [shape = 's32[1]{0}', space=sflag, size = 0x4, scoped, tag = 'scoped memory for tpu_custom_call.1']
    %8 = vsyncpa [#allocation3], 0
    // Predicated region
    $region2: #{tpu_custom_call.1} parent=1 // pred_check
      _
    $region3: #{tpu_custom_call.1} parent=1 // pred_check_branch
      %10 = sbr.rel (0) target = $region5
    $region4: #{tpu_custom_call.1} parent=1 // pred_region
      _
    $region5: #{tpu_custom_call.1} parent=1 // pred_fallthru
      _
    // Predicated region
    $region6: #{tpu_custom_call.1} parent=1 // pred_check
      _
    $region7: #{tpu_custom_call.1} parent=1 // pred_check_branch
      %12 = sbr.rel (0) target = $region9
    $region8: #{tpu_custom_call.1} parent=1 // pred_region
      _
    $region9: #{tpu_custom_call.1} parent=1 // pred_fallthru
      _
    // Predicated region
    $region10: #{tpu_custom_call.1} parent=1 // pred_check
      _
    $region11: #{tpu_custom_call.1} parent=1 // pred_check_branch
      %14 = sbr.rel (0) target = $region13
    $region12: #{tpu_custom_call.1} parent=1 // pred_region
      _
    $region13: #{tpu_custom_call.1} parent=1 // pred_fallthru
      _
    %v15 = vld [vmem:[%s0] sm:$0xf]
    %v16 = vld [vmem:[%s1] sm:$0xf]
    %v17 = vld [vmem:[%s1 + $0x4] sm:$0xf]
    %v18 = vld [vmem:[%s1 + $0x8] sm:$0xf]
    %v19 = vld [vmem:[%s1 + $0xc] sm:$0xf]
    %v20 = vld [vmem:[%s1 + $0x10] sm:$0xf]
    %v21 = vld [vmem:[%s1 + $0x14] sm:$0xf]
    %v22 = vld [vmem:[%s1 + $0x18] sm:$0xf]
    %v23 = vld [vmem:[%s1 + $0x1c] sm:$0xf]
    %v24 = vld [vmem:[%s1 + $0x20] sm:$0xf]
    %v25 = vld [vmem:[%s1 + $0x24] sm:$0xf]
    %v26 = vld [vmem:[%s1 + $0x28] sm:$0xf]
    %v27 = vld [vmem:[%s1 + $0x2c] sm:$0xf]
    %v28 = vld [vmem:[%s1 + $0x30] sm:$0xf]
    %v29 = vld [vmem:[%s1 + $0x34] sm:$0xf]
    %v30 = vld [vmem:[%s1 + $0x38] sm:$0xf]
    %v31 = vld [vmem:[%s1 + $0x3c] sm:$0xf]
    %v32 = vld [vmem:[%s2] sm:$0xff]
    %v49 = vunpack.c.l.b16 %v16
    %v50 = vunpack.c.l.b16 %v17
    %v51 = vunpack.c.l.b16 %v18
    %v52 = vunpack.c.l.b16 %v19
    %v53 = vunpack.c.l.b16 %v20
    %v54 = vunpack.c.l.b16 %v21
    %v55 = vunpack.c.l.b16 %v22
    %v56 = vunpack.c.l.b16 %v23
    %v57 = vunpack.c.l.b16 %v24
    %v58 = vunpack.c.l.b16 %v25
    %v59 = vunpack.c.l.b16 %v26
    %v60 = vunpack.c.l.b16 %v27
    %v61 = vunpack.c.l.b16 %v28
    %v62 = vunpack.c.l.b16 %v29
    %v63 = vunpack.c.l.b16 %v30
    %v64 = vunpack.c.l.b16 %v31
    %v65 = vpack.c.b16 %v50, %v49
    %v66 = vpack.c.b16 %v52, %v51
    %v67 = vpack.c.b16 %v54, %v53
    %v68 = vpack.c.b16 %v56, %v55
    %v69 = vpack.c.b16 %v58, %v57
    %v70 = vpack.c.b16 %v60, %v59
    %v71 = vpack.c.b16 %v62, %v61
    %v72 = vpack.c.b16 %v64, %v63
    %81 = vmatpush.bf16.msra.mxu0 %v72
    %82 = vmatpush.bf16.msra.mxu0 %v71
    %83 = vmatpush.bf16.msra.mxu0 %v70
    %84 = vmatpush.bf16.msra.mxu0 %v69
    %85 = vmatpush.bf16.msra.mxu0 %v68
    %86 = vmatpush.bf16.msra.mxu0 %v67
    %87 = vmatpush.bf16.msra.mxu0 %v66
    %88 = vmatpush.bf16.msra.mxu0 %v65
    %89 = vmatmul.bf16.gmra.mxu0 %v15
    %v90 = vpop.f32.mrf.mxu0
    %v91 = vadd.f32 %v32, %v90
    %v92 = vpop.f32.mrf.mxu0
    %93 = vdwg.mxu0
    %v94 = vlog2.pop %v91
    %v95 = vmul.f32 %v94, 0.6931472
    %vm96 = vcmask 7168
    %v97 = vsel %vm96, %v95, 0.0
    %v98 = vrot.slane %v97, 4
    %v99 = vadd.f32 %v97, %v98
    %v100 = vrot.slane %v99, 2
    %v101 = vadd.f32 %v99, %v100
    %v102 = vrot.slane %v101, 1
    %v103 = vadd.f32 %v101, %v102
    %105 = vset.pattern.permute.xlu0 0
    %106 = vperm.xlu0 %105, %v103
    %v107 = vpop.permute.xlu0 %106
    %109 = vst [vmem:[#allocation2] sm:$0xff] %v107
    // Predicated region
    $region14: #{tpu_custom_call.1} parent=1 // pred_check
      _
    $region15: #{tpu_custom_call.1} parent=1 // pred_check_branch
      %111 = sbr.rel (0) target = $region17
    $region16: #{tpu_custom_call.1} parent=1 // pred_region
      %113 = vsyncadd [#allocation3], 0
      %s115 = sshll.u32 [#allocation2], 4
      %s116 = int_to_ptr.vmem [resolvable:$true] %s115
      %s117 = sshll.u32 %s3, 4
      %s118 = int_to_ptr.hbm [resolvable:$true] %s117
      %120 = dma.vmem_to_hbm [thread:$0]  %s116, 128, %s118, [#allocation3]
    $region17: #{tpu_custom_call.1} parent=1 // pred_fallthru
      _
    // Predicated region
    $region18: #{tpu_custom_call.1} parent=1 // pred_check
      _
    $region19: #{tpu_custom_call.1} parent=1 // pred_check_branch
      %122 = sbr.rel (0) target = $region21
    $region20: #{tpu_custom_call.1} parent=1 // pred_region
      %124 = dma.done [#allocation3], 128
    $region21: #{tpu_custom_call.1} parent=1 // pred_fallthru
      _
    %125 = vsyncpa [#allocation3], 1

</llo_original>
